<compile_context>
chip_gen: v7x
topology: tpu7x:2x2x1
jax: 0.10.0
libtpu: 0.0.40
codegen_flags: <defaults>
</compile_context>

<pallas_src>
import jax
import jax.numpy as jnp
from jax.experimental import pallas as pl
from jax.experimental.pallas import tpu as pltpu

HIDDEN_LAYERS = 2       # HIDDEN_LAYERS default (assumed)
HIDDEN_SIZE = 32        # HIDDEN_SIZE default (assumed)
NEGATIVE_SLOPE = 0.01   # NEGATIVE_SLOPE default (assumed)
NUM_ACTIONS = 5         # env.action_space.n (assumed)
NUM_PLAYERS = 8
NUM_PELLETS = 16
RAW_FEATS = 3           # [mass, x, y]
FEAT_PAD = 32           # raw feats zero-padded to 32 lanes (== HIDDEN_SIZE so a
                        # single (L, 3, C, H) weight slab covers every layer)
ACT_PAD = 128           # lane-dense kernel output; wrapper slices back to NUM_ACTIONS
BATCH = 4               # graphs per pallas_call (raise to ~64-256 in production
                        # to amortize launch cost / fill the MXU M dimension)

assert FEAT_PAD == HIDDEN_SIZE, "weight slab stacking assumes layer-0 C == H"


def _leaky_relu(x, slope=NEGATIVE_SLOPE):
    return jnp.where(x >= 0, x, slope * x)


def _gnn_kernel(px_ref, qx_ref, w_play_ref, w_pel_ref, b_ref,
                w_out_ref, b_out_ref, out_ref):
    """All graphs of this grid step, folded into the matmul M dimension.

    px_ref:     (Bb*P, C)      player features (Bb graphs of this step)
    qx_ref:     (Bb*Q, C)      pellet features
    w_play_ref: (L, 3, C, H)   per-layer [w_pp, w_sage_l, w_sage_r]
    w_pel_ref:  (L, C, H)      per-layer w_qq
    b_ref:      (L, 2, H)      row 0 = b_pp + b_sage, row 1 = b_qq
    w_out_ref:  (H, ACT_PAD)   zero columns beyond NUM_ACTIONS
    b_out_ref:  (1, ACT_PAD)   -1e30 on padded lanes
    out_ref:    (Bb*P, ACT_PAD) lane-dense log-probs (wrapper slices to A)
    """
    bb = px_ref.shape[0] // NUM_PLAYERS

    p = px_ref[...]                                                  # (Bb*P, C)
    # Pellet state carried as one row per graph: mean of inputs for layer 0,
    # and the (identical-per-node) hidden row thereafter.
    q_state = jnp.mean(
        qx_ref[...].reshape(bb, NUM_PELLETS, FEAT_PAD), axis=1)      # (Bb, C)

    for l in range(HIDDEN_LAYERS):                                   # static unroll
        wl = w_play_ref[l]                                           # (3, C, H)
        w_pp, w_sl, w_sr = wl[0], wl[1], wl[2]
        w_qq = w_pel_ref[l]                                          # (C, H)
        b_l = b_ref[l]                                               # (2, H)
        b_play = b_l[0:1, :]
        b_pel = b_l[1:2, :]

        c = p.shape[1]
        mean_p = jnp.mean(p.reshape(bb, NUM_PLAYERS, c), axis=1)     # (Bb, C)

        # Per-graph term (GCN player->player + SAGE neighbor branch):
        # two tiny (Bb, C) @ (C, H) pushes, broadcast over the P nodes below.
        graph_row = (jnp.dot(mean_p, w_pp, preferred_element_type=jnp.float32)
                     + jnp.dot(q_state, w_sl, preferred_element_type=jnp.float32)
                     + b_play)                                       # (Bb, H)
        # Per-node term (SAGE root branch): one (Bb*P, C) @ (C, H) push.
        node_row = jnp.dot(p, w_sr, preferred_element_type=jnp.float32)  # (Bb*P, H)

        p = _leaky_relu(
            (node_row.reshape(bb, NUM_PLAYERS, HIDDEN_SIZE)
             + graph_row[:, None, :]
             ).reshape(bb * NUM_PLAYERS, HIDDEN_SIZE))               # (Bb*P, H)

        # Pellet update: GCN pellet->pellet; one identical row per graph.
        q_state = _leaky_relu(
            jnp.dot(q_state, w_qq, preferred_element_type=jnp.float32) + b_pel)

    # Lane-dense logits: padded weight columns are zero, padded biases -1e30,
    # so a full-128-lane log_softmax equals one over the real action lanes.
    logits = (jnp.dot(p, w_out_ref[...], preferred_element_type=jnp.float32)
              + b_out_ref[...])                                      # (Bb*P, 128)
    m = jnp.max(logits, axis=-1, keepdims=True)
    z = logits - m
    out_ref[...] = z - jnp.log(jnp.sum(jnp.exp(z), axis=-1, keepdims=True))


def _num_grid_blocks(batch):
    """v7x has 2 TensorCores per chip -> give each one meaty step.

    On v5e/v6e there is a single TC, so extra grid steps are pure fixed
    per-step overhead; use one step.
    """
    try:
        kind = jax.devices()[0].device_kind.lower()
    except Exception:
        kind = ""
    if "v7" in kind and batch % 2 == 0:
        return 2
    return 1


def gnn_forward(player_x, pellet_x, packed_params, grid_blocks=None):
    """player_x: (B, P, FEAT_PAD), pellet_x: (B, Q, FEAT_PAD) -> (B, P, A)."""
    B = player_x.shape[0]
    if grid_blocks is None:
        grid_blocks = _num_grid_blocks(B)
    assert B % grid_blocks == 0
    bb = B // grid_blocks

    w_play, w_pel, b_all, w_out, b_out = packed_params
    px = player_x.reshape(B * NUM_PLAYERS, FEAT_PAD)
    qx = pellet_x.reshape(B * NUM_PELLETS, FEAT_PAD)

    const4 = lambda g: (0, 0, 0, 0)
    const3 = lambda g: (0, 0, 0)
    const2 = lambda g: (0, 0)

    out_flat = pl.pallas_call(
        _gnn_kernel,
        out_shape=jax.ShapeDtypeStruct((B * NUM_PLAYERS, ACT_PAD), jnp.float32),
        grid=(grid_blocks,),
        in_specs=[
            pl.BlockSpec((bb * NUM_PLAYERS, FEAT_PAD), lambda g: (g, 0)),
            pl.BlockSpec((bb * NUM_PELLETS, FEAT_PAD), lambda g: (g, 0)),
            pl.BlockSpec(w_play.shape, const4),   # shared weights, constant block
            pl.BlockSpec(w_pel.shape, const3),
            pl.BlockSpec(b_all.shape, const3),
            pl.BlockSpec(w_out.shape, const2),
            pl.BlockSpec(b_out.shape, const2),
        ],
        out_specs=pl.BlockSpec((bb * NUM_PLAYERS, ACT_PAD), lambda g: (g, 0)),
        compiler_params=pltpu.CompilerParams(
            dimension_semantics=("parallel",)),   # v7x: split batch over 2 TCs
    )(px, qx, w_play, w_pel, b_all, w_out, b_out)

    return out_flat[:, :NUM_ACTIONS].reshape(B, NUM_PLAYERS, NUM_ACTIONS)


# ---------------------------------------------------------------------------
# Parameter init (raw, module-like layout) + wrapper-side packing into slabs.
# ---------------------------------------------------------------------------
def init_raw_params(key):
    def glorot(k, shape):
        fan_in, fan_out = shape
        lim = jnp.sqrt(6.0 / (fan_in + fan_out))
        return jax.random.uniform(k, shape, jnp.float32, -lim, lim)

    def bias(k, n):
        return jax.random.uniform(k, (1, n), jnp.float32, -0.1, 0.1)

    params = []
    c_in = FEAT_PAD  # layer-0 lazy (-1) input dim = 3, zero-padded to FEAT_PAD
    for layer in range(HIDDEN_LAYERS):
        ks = jax.random.split(jax.random.fold_in(key, layer), 7)
        w_pp = glorot(ks[0], (c_in, HIDDEN_SIZE))   # GCN player->player
        b_pp = bias(ks[1], HIDDEN_SIZE)
        w_sl = glorot(ks[2], (c_in, HIDDEN_SIZE))   # SAGE lin_l (neighbors)
        w_sr = glorot(ks[3], (c_in, HIDDEN_SIZE))   # SAGE lin_r (root)
        b_s = bias(ks[4], HIDDEN_SIZE)
        w_qq = glorot(ks[5], (c_in, HIDDEN_SIZE))   # GCN pellet->pellet
        b_qq = bias(ks[6], HIDDEN_SIZE)
        params += [w_pp, b_pp, w_sl, w_sr, b_s, w_qq, b_qq]
        c_in = HIDDEN_SIZE
    ks = jax.random.split(jax.random.fold_in(key, 1000), 2)
    w_out = glorot(ks[0], (HIDDEN_SIZE, NUM_ACTIONS))   # post_mp Linear
    b_out = bias(ks[1], NUM_ACTIONS)
    params += [w_out, b_out]
    return params


def pack_params(raw):
    """Stack the 18 per-module tensors into 5 kernel slabs (wrapper-side)."""
    w_play, w_pel, b_all = [], [], []
    idx = 0
    for _ in range(HIDDEN_LAYERS):
        w_pp, b_pp, w_sl, w_sr, b_s, w_qq, b_qq = raw[idx:idx + 7]
        idx += 7
        w_play.append(jnp.stack([w_pp, w_sl, w_sr], axis=0))         # (3, C, H)
        w_pel.append(w_qq)                                           # (C, H)
        b_all.append(jnp.concatenate([b_pp + b_s, b_qq], axis=0))    # (2, H)
    w_out, b_out = raw[idx], raw[idx + 1]
    # Lane-dense output head: zero weight columns + -1e30 biases on padded
    # lanes so the in-kernel full-128-lane log_softmax is exact on real lanes.
    w_out_pad = jnp.pad(w_out, ((0, 0), (0, ACT_PAD - NUM_ACTIONS)))
    b_out_pad = jnp.pad(b_out, ((0, 0), (0, ACT_PAD - NUM_ACTIONS)),
                        constant_values=-1e30)
    return (jnp.stack(w_play), jnp.stack(w_pel), jnp.stack(b_all),
            w_out_pad, b_out_pad)


# ---------------------------------------------------------------------------
# Pure-JAX reference with the original (unfused) formulation, for verification.
# ---------------------------------------------------------------------------
def reference_single(px, qx, raw):
    idx = 0
    for _ in range(HIDDEN_LAYERS):
        w_pp, b_pp, w_sl, w_sr, b_s, w_qq, b_qq = raw[idx:idx + 7]
        idx += 7
        gcn_p = jnp.mean(px @ w_pp, axis=0, keepdims=True) + b_pp
        sage_p = jnp.mean(qx, axis=0, keepdims=True) @ w_sl + px @ w_sr + b_s
        gcn_q = jnp.mean(qx @ w_qq, axis=0, keepdims=True) + b_qq
        px = _leaky_relu(gcn_p + sage_p)
        qx = _leaky_relu(jnp.broadcast_to(gcn_q, (qx.shape[0], HIDDEN_SIZE)))
    w_out, b_out = raw[idx], raw[idx + 1]
    return jax.nn.log_softmax(px @ w_out + b_out, axis=-1)


if __name__ == "__main__":
    key = jax.random.PRNGKey(0)
    k_obs, k_par = jax.random.split(key)
    k_mass, k_ploc, k_qloc = jax.random.split(k_obs, 3)

    # Synthetic batch of "observations" (graph construction -> dense features).
    player_masses = jax.random.uniform(
        k_mass, (BATCH, NUM_PLAYERS), jnp.float32, 0.1, 1.0)
    player_locations = jax.random.uniform(
        k_ploc, (BATCH, NUM_PLAYERS, 2), jnp.float32)
    pellet_locations = jax.random.uniform(
        k_qloc, (BATCH, NUM_PELLETS, 2), jnp.float32)
    pellet_mass = 1.0 / 100.0  # env.pellet_mass / env.max_player_mass (assumed)

    player_x = jnp.concatenate(
        [player_masses[..., None], player_locations], axis=-1)        # (B,P,3)
    pellet_x = jnp.concatenate(
        [jnp.full((BATCH, NUM_PELLETS, 1), pellet_mass, jnp.float32),
         pellet_locations], axis=-1)                                   # (B,Q,3)

    # Zero-pad the 3 raw feature lanes up to FEAT_PAD (pure layout glue).
    player_x = jnp.pad(player_x, ((0, 0), (0, 0), (0, FEAT_PAD - RAW_FEATS)))
    pellet_x = jnp.pad(pellet_x, ((0, 0), (0, 0), (0, FEAT_PAD - RAW_FEATS)))

    raw_params = init_raw_params(k_par)
    packed = pack_params(raw_params)

    out = gnn_forward(player_x, pellet_x, packed)
    out = jax.block_until_ready(out)

    ref = jax.vmap(lambda p, q: reference_single(p, q, raw_params))(
        player_x, pellet_x)
    assert out.shape == (BATCH, NUM_PLAYERS, NUM_ACTIONS)
    assert jnp.allclose(out, ref, atol=1e-4, rtol=1e-4), "mismatch vs JAX reference"

    print("KERNEL_OK")
</pallas_src>

<mosaic_0001>
module attributes {stable_mosaic.version = 11 : i64} {
  func.func @_gnn_kernel(%arg0: i32, %arg1: memref<32x32xf32, #tpu.memory_space<vmem>>, %arg2: memref<64x32xf32, #tpu.memory_space<vmem>>, %arg3: memref<2x3x32x32xf32, #tpu.memory_space<vmem>>, %arg4: memref<2x32x32xf32, #tpu.memory_space<vmem>>, %arg5: memref<2x2x32xf32, #tpu.memory_space<vmem>>, %arg6: memref<32x128xf32, #tpu.memory_space<vmem>>, %arg7: memref<1x128xf32, #tpu.memory_space<vmem>>, %arg8: memref<32x128xf32, #tpu.memory_space<vmem>>) attributes {dimension_semantics = [#tpu.dimension_semantics<parallel>], iteration_bounds = array<i64: 1>, scalar_prefetch = 0 : i64, scratch_operands = 0 : i64, tpu.core_type = #tpu.core_type<tc>, window_params = [{transform_indices = @transform_0, window_bounds = array<i64: 32, 32>}, {transform_indices = @transform_1, window_bounds = array<i64: 64, 32>}, {pipeline_mode = #tpu.pipeline_mode<synchronous>, transform_indices = @transform_2, window_bounds = array<i64: 2, 3, 32, 32>}, {pipeline_mode = #tpu.pipeline_mode<synchronous>, transform_indices = @transform_3, window_bounds = array<i64: 2, 32, 32>}, {pipeline_mode = #tpu.pipeline_mode<synchronous>, transform_indices = @transform_4, window_bounds = array<i64: 2, 2, 32>}, {pipeline_mode = #tpu.pipeline_mode<synchronous>, transform_indices = @transform_5, window_bounds = array<i64: 32, 128>}, {pipeline_mode = #tpu.pipeline_mode<synchronous>, transform_indices = @transform_6, window_bounds = array<i64: 1, 128>}, {transform_indices = @transform_7, window_bounds = array<i64: 32, 128>}]} {
    %c0 = arith.constant 0 : index
    %c0_0 = arith.constant 0 : index
    %0 = vector.load %arg1[%c0, %c0_0] : memref<32x32xf32, #tpu.memory_space<vmem>>, vector<32x32xf32>
    %c0_1 = arith.constant 0 : index
    %c0_2 = arith.constant 0 : index
    %1 = vector.load %arg2[%c0_1, %c0_2] : memref<64x32xf32, #tpu.memory_space<vmem>>, vector<64x32xf32>
    %2 = vector.shape_cast %1 : vector<64x32xf32> to vector<4x16x32xf32>
    %cst = arith.constant dense<0.000000e+00> : vector<4x32xf32>
    %3 = vector.multi_reduction <add>, %2, %cst [1] : vector<4x16x32xf32> to vector<4x32xf32>
    %cst_3 = arith.constant 1.600000e+01 : f32
    %4 = vector.broadcast %cst_3 : f32 to vector<4x32xf32>
    %5 = arith.divf %3, %4 : vector<4x32xf32>
    %c0_4 = arith.constant 0 : index
    %c0_5 = arith.constant 0 : index
    %c0_6 = arith.constant 0 : index
    %c0_7 = arith.constant 0 : index
    %6 = vector.load %arg3[%c0_4, %c0_5, %c0_6, %c0_7] : memref<2x3x32x32xf32, #tpu.memory_space<vmem>>, vector<1x3x32x32xf32>
    %7 = vector.shape_cast %6 : vector<1x3x32x32xf32> to vector<3x32x32xf32>
    %8 = vector.extract_strided_slice %7 {offsets = [0, 0, 0], sizes = [1, 32, 32], strides = [1, 1, 1]} : vector<3x32x32xf32> to vector<1x32x32xf32>
    %9 = vector.shape_cast %8 : vector<1x32x32xf32> to vector<32x32xf32>
    %10 = vector.extract_strided_slice %7 {offsets = [1, 0, 0], sizes = [1, 32, 32], strides = [1, 1, 1]} : vector<3x32x32xf32> to vector<1x32x32xf32>
    %11 = vector.shape_cast %10 : vector<1x32x32xf32> to vector<32x32xf32>
    %12 = vector.extract_strided_slice %7 {offsets = [2, 0, 0], sizes = [1, 32, 32], strides = [1, 1, 1]} : vector<3x32x32xf32> to vector<1x32x32xf32>
    %13 = vector.shape_cast %12 : vector<1x32x32xf32> to vector<32x32xf32>
    %c0_8 = arith.constant 0 : index
    %c0_9 = arith.constant 0 : index
    %c0_10 = arith.constant 0 : index
    %14 = vector.load %arg4[%c0_8, %c0_9, %c0_10] : memref<2x32x32xf32, #tpu.memory_space<vmem>>, vector<1x32x32xf32>
    %15 = vector.shape_cast %14 : vector<1x32x32xf32> to vector<32x32xf32>
    %c0_11 = arith.constant 0 : index
    %c0_12 = arith.constant 0 : index
    %c0_13 = arith.constant 0 : index
    %16 = vector.load %arg5[%c0_11, %c0_12, %c0_13] : memref<2x2x32xf32, #tpu.memory_space<vmem>>, vector<1x2x32xf32>
    %17 = vector.shape_cast %16 : vector<1x2x32xf32> to vector<2x32xf32>
    %18 = vector.extract_strided_slice %17 {offsets = [0, 0], sizes = [1, 32], strides = [1, 1]} : vector<2x32xf32> to vector<1x32xf32>
    %19 = vector.extract_strided_slice %17 {offsets = [1, 0], sizes = [1, 32], strides = [1, 1]} : vector<2x32xf32> to vector<1x32xf32>
    %20 = vector.shape_cast %0 : vector<32x32xf32> to vector<4x8x32xf32>
    %cst_14 = arith.constant dense<0.000000e+00> : vector<4x32xf32>
    %21 = vector.multi_reduction <add>, %20, %cst_14 [1] : vector<4x8x32xf32> to vector<4x32xf32>
    %cst_15 = arith.constant 8.000000e+00 : f32
    %22 = vector.broadcast %cst_15 : f32 to vector<4x32xf32>
    %23 = arith.divf %21, %22 : vector<4x32xf32>
    %cst_16 = arith.constant dense<0.000000e+00> : vector<4x32xf32>
    %24 = tpu.matmul %23, %9, %cst_16 {dimension_numbers = #tpu.dot_dimension_numbers<[1], [0], [0], [1], [0, 0, 1, 1], [], []>} : vector<4x32xf32>, vector<32x32xf32>, vector<4x32xf32> -> vector<4x32xf32>
    %cst_17 = arith.constant dense<0.000000e+00> : vector<4x32xf32>
    %25 = tpu.matmul %5, %11, %cst_17 {dimension_numbers = #tpu.dot_dimension_numbers<[1], [0], [0], [1], [0, 0, 1, 1], [], []>} : vector<4x32xf32>, vector<32x32xf32>, vector<4x32xf32> -> vector<4x32xf32>
    %26 = arith.addf %24, %25 : vector<4x32xf32>
    %27 = vector.broadcast %18 : vector<1x32xf32> to vector<4x32xf32>
    %28 = arith.addf %26, %27 : vector<4x32xf32>
    %cst_18 = arith.constant dense<0.000000e+00> : vector<32x32xf32>
    %29 = tpu.matmul %0, %13, %cst_18 {dimension_numbers = #tpu.dot_dimension_numbers<[1], [0], [0], [1], [0, 0, 1, 1], [], []>} : vector<32x32xf32>, vector<32x32xf32>, vector<32x32xf32> -> vector<32x32xf32>
    %30 = vector.shape_cast %29 : vector<32x32xf32> to vector<4x8x32xf32>
    %31 = vector.shape_cast %28 : vector<4x32xf32> to vector<4x1x32xf32>
    %32 = vector.broadcast %31 : vector<4x1x32xf32> to vector<4x8x32xf32>
    %33 = arith.addf %30, %32 : vector<4x8x32xf32>
    %34 = vector.shape_cast %33 : vector<4x8x32xf32> to vector<32x32xf32>
    %cst_19 = arith.constant 0.000000e+00 : f32
    %35 = vector.broadcast %cst_19 : f32 to vector<32x32xf32>
    %36 = arith.cmpf oge, %34, %35 : vector<32x32xf32>
    %cst_20 = arith.constant 0.00999999977 : f32
    %37 = vector.broadcast %cst_20 : f32 to vector<32x32xf32>
    %38 = arith.mulf %37, %34 : vector<32x32xf32>
    %39 = arith.select %36, %34, %38 : vector<32x32xi1>, vector<32x32xf32>
    %cst_21 = arith.constant dense<0.000000e+00> : vector<4x32xf32>
    %40 = tpu.matmul %5, %15, %cst_21 {dimension_numbers = #tpu.dot_dimension_numbers<[1], [0], [0], [1], [0, 0, 1, 1], [], []>} : vector<4x32xf32>, vector<32x32xf32>, vector<4x32xf32> -> vector<4x32xf32>
    %41 = vector.broadcast %19 : vector<1x32xf32> to vector<4x32xf32>
    %42 = arith.addf %40, %41 : vector<4x32xf32>
    %cst_22 = arith.constant 0.000000e+00 : f32
    %43 = vector.broadcast %cst_22 : f32 to vector<4x32xf32>
    %44 = arith.cmpf oge, %42, %43 : vector<4x32xf32>
    %cst_23 = arith.constant 0.00999999977 : f32
    %45 = vector.broadcast %cst_23 : f32 to vector<4x32xf32>
    %46 = arith.mulf %45, %42 : vector<4x32xf32>
    %47 = arith.select %44, %42, %46 : vector<4x32xi1>, vector<4x32xf32>
    %c1 = arith.constant 1 : index
    %c0_24 = arith.constant 0 : index
    %c0_25 = arith.constant 0 : index
    %c0_26 = arith.constant 0 : index
    %48 = vector.load %arg3[%c1, %c0_24, %c0_25, %c0_26] : memref<2x3x32x32xf32, #tpu.memory_space<vmem>>, vector<1x3x32x32xf32>
    %49 = vector.shape_cast %48 : vector<1x3x32x32xf32> to vector<3x32x32xf32>
    %50 = vector.extract_strided_slice %49 {offsets = [0, 0, 0], sizes = [1, 32, 32], strides = [1, 1, 1]} : vector<3x32x32xf32> to vector<1x32x32xf32>
    %51 = vector.shape_cast %50 : vector<1x32x32xf32> to vector<32x32xf32>
    %52 = vector.extract_strided_slice %49 {offsets = [1, 0, 0], sizes = [1, 32, 32], strides = [1, 1, 1]} : vector<3x32x32xf32> to vector<1x32x32xf32>
    %53 = vector.shape_cast %52 : vector<1x32x32xf32> to vector<32x32xf32>
    %54 = vector.extract_strided_slice %49 {offsets = [2, 0, 0], sizes = [1, 32, 32], strides = [1, 1, 1]} : vector<3x32x32xf32> to vector<1x32x32xf32>
    %55 = vector.shape_cast %54 : vector<1x32x32xf32> to vector<32x32xf32>
    %c1_27 = arith.constant 1 : index
    %c0_28 = arith.constant 0 : index
    %c0_29 = arith.constant 0 : index
    %56 = vector.load %arg5[%c1_27, %c0_28, %c0_29] : memref<2x2x32xf32, #tpu.memory_space<vmem>>, vector<1x2x32xf32>
    %57 = vector.shape_cast %56 : vector<1x2x32xf32> to vector<2x32xf32>
    %58 = vector.extract_strided_slice %57 {offsets = [0, 0], sizes = [1, 32], strides = [1, 1]} : vector<2x32xf32> to vector<1x32xf32>
    %59 = vector.shape_cast %39 : vector<32x32xf32> to vector<4x8x32xf32>
    %cst_30 = arith.constant dense<0.000000e+00> : vector<4x32xf32>
    %60 = vector.multi_reduction <add>, %59, %cst_30 [1] : vector<4x8x32xf32> to vector<4x32xf32>
    %cst_31 = arith.constant 8.000000e+00 : f32
    %61 = vector.broadcast %cst_31 : f32 to vector<4x32xf32>
    %62 = arith.divf %60, %61 : vector<4x32xf32>
    %cst_32 = arith.constant dense<0.000000e+00> : vector<4x32xf32>
    %63 = tpu.matmul %62, %51, %cst_32 {dimension_numbers = #tpu.dot_dimension_numbers<[1], [0], [0], [1], [0, 0, 1, 1], [], []>} : vector<4x32xf32>, vector<32x32xf32>, vector<4x32xf32> -> vector<4x32xf32>
    %cst_33 = arith.constant dense<0.000000e+00> : vector<4x32xf32>
    %64 = tpu.matmul %47, %53, %cst_33 {dimension_numbers = #tpu.dot_dimension_numbers<[1], [0], [0], [1], [0, 0, 1, 1], [], []>} : vector<4x32xf32>, vector<32x32xf32>, vector<4x32xf32> -> vector<4x32xf32>
    %65 = arith.addf %63, %64 : vector<4x32xf32>
    %66 = vector.broadcast %58 : vector<1x32xf32> to vector<4x32xf32>
    %67 = arith.addf %65, %66 : vector<4x32xf32>
    %cst_34 = arith.constant dense<0.000000e+00> : vector<32x32xf32>
    %68 = tpu.matmul %39, %55, %cst_34 {dimension_numbers = #tpu.dot_dimension_numbers<[1], [0], [0], [1], [0, 0, 1, 1], [], []>} : vector<32x32xf32>, vector<32x32xf32>, vector<32x32xf32> -> vector<32x32xf32>
    %69 = vector.shape_cast %68 : vector<32x32xf32> to vector<4x8x32xf32>
    %70 = vector.shape_cast %67 : vector<4x32xf32> to vector<4x1x32xf32>
    %71 = vector.broadcast %70 : vector<4x1x32xf32> to vector<4x8x32xf32>
    %72 = arith.addf %69, %71 : vector<4x8x32xf32>
    %73 = vector.shape_cast %72 : vector<4x8x32xf32> to vector<32x32xf32>
    %cst_35 = arith.constant 0.000000e+00 : f32
    %74 = vector.broadcast %cst_35 : f32 to vector<32x32xf32>
    %75 = arith.cmpf oge, %73, %74 : vector<32x32xf32>
    %cst_36 = arith.constant 0.00999999977 : f32
    %76 = vector.broadcast %cst_36 : f32 to vector<32x32xf32>
    %77 = arith.mulf %76, %73 : vector<32x32xf32>
    %78 = arith.select %75, %73, %77 : vector<32x32xi1>, vector<32x32xf32>
    %c0_37 = arith.constant 0 : index
    %c0_38 = arith.constant 0 : index
    %79 = vector.load %arg6[%c0_37, %c0_38] : memref<32x128xf32, #tpu.memory_space<vmem>>, vector<32x128xf32>
    %cst_39 = arith.constant dense<0.000000e+00> : vector<32x128xf32>
    %80 = tpu.matmul %78, %79, %cst_39 {dimension_numbers = #tpu.dot_dimension_numbers<[1], [0], [0], [1], [0, 0, 1, 1], [], []>} : vector<32x32xf32>, vector<32x128xf32>, vector<32x128xf32> -> vector<32x128xf32>
    %c0_40 = arith.constant 0 : index
    %c0_41 = arith.constant 0 : index
    %81 = vector.load %arg7[%c0_40, %c0_41] : memref<1x128xf32, #tpu.memory_space<vmem>>, vector<1x128xf32>
    %82 = vector.broadcast %81 : vector<1x128xf32> to vector<32x128xf32>
    %83 = arith.addf %80, %82 : vector<32x128xf32>
    %cst_42 = arith.constant dense<0xFF800000> : vector<32xf32>
    %84 = vector.multi_reduction <maximumf>, %83, %cst_42 [1] : vector<32x128xf32> to vector<32xf32>
    %85 = vector.shape_cast %84 : vector<32xf32> to vector<32x1xf32>
    %86 = vector.broadcast %85 : vector<32x1xf32> to vector<32x128xf32>
    %87 = arith.subf %83, %86 : vector<32x128xf32>
    %88 = math.exp %87 : vector<32x128xf32>
    %cst_43 = arith.constant dense<0.000000e+00> : vector<32xf32>
    %89 = vector.multi_reduction <add>, %88, %cst_43 [1] : vector<32x128xf32> to vector<32xf32>
    %90 = vector.shape_cast %89 : vector<32xf32> to vector<32x1xf32>
    %91 = math.log %90 : vector<32x1xf32>
    %92 = vector.broadcast %91 : vector<32x1xf32> to vector<32x128xf32>
    %93 = arith.subf %87, %92 : vector<32x128xf32>
    %c0_44 = arith.constant 0 : index
    %c0_45 = arith.constant 0 : index
    %94 = vector.load %arg8[%c0_44, %c0_45] : memref<32x128xf32, #tpu.memory_space<vmem>>, vector<32x128xf32>
    tpu.vector_store %arg8[%c0_44, %c0_45], %93 {strides = array<i32>} : memref<32x128xf32, #tpu.memory_space<vmem>>, vector<32x128xf32>,
    return
  }
  func.func @transform_0(%arg0: i32) -> (i32, i32) {
    %c0_i32 = arith.constant 0 : i32
    %c0_i32_0 = arith.constant 0 : i32
    return %arg0, %c0_i32 : i32, i32
  }
  func.func @transform_1(%arg0: i32) -> (i32, i32) {
    %c0_i32 = arith.constant 0 : i32
    %c0_i32_0 = arith.constant 0 : i32
    return %arg0, %c0_i32 : i32, i32
  }
  func.func @transform_2(%arg0: i32) -> (i32, i32, i32, i32) {
    %c0_i32 = arith.constant 0 : i32
    %c0_i32_0 = arith.constant 0 : i32
    %c0_i32_1 = arith.constant 0 : i32
    %c0_i32_2 = arith.constant 0 : i32
    %c0_i32_3 = arith.constant 0 : i32
    return %c0_i32, %c0_i32_0, %c0_i32_1, %c0_i32_2 : i32, i32, i32, i32
  }
  func.func @transform_3(%arg0: i32) -> (i32, i32, i32) {
    %c0_i32 = arith.constant 0 : i32
    %c0_i32_0 = arith.constant 0 : i32
    %c0_i32_1 = arith.constant 0 : i32
    %c0_i32_2 = arith.constant 0 : i32
    return %c0_i32, %c0_i32_0, %c0_i32_1 : i32, i32, i32
  }
  func.func @transform_4(%arg0: i32) -> (i32, i32, i32) {
    %c0_i32 = arith.constant 0 : i32
    %c0_i32_0 = arith.constant 0 : i32
    %c0_i32_1 = arith.constant 0 : i32
    %c0_i32_2 = arith.constant 0 : i32
    return %c0_i32, %c0_i32_0, %c0_i32_1 : i32, i32, i32
  }
  func.func @transform_5(%arg0: i32) -> (i32, i32) {
    %c0_i32 = arith.constant 0 : i32
    %c0_i32_0 = arith.constant 0 : i32
    %c0_i32_1 = arith.constant 0 : i32
    return %c0_i32, %c0_i32_0 : i32, i32
  }
  func.func @transform_6(%arg0: i32) -> (i32, i32) {
    %c0_i32 = arith.constant 0 : i32
    %c0_i32_0 = arith.constant 0 : i32
    %c0_i32_1 = arith.constant 0 : i32
    return %c0_i32, %c0_i32_0 : i32, i32
  }
  func.func @transform_7(%arg0: i32) -> (i32, i32) {
    %c0_i32 = arith.constant 0 : i32
    %c0_i32_0 = arith.constant 0 : i32
    return %arg0, %c0_i32 : i32, i32
  }
}

</mosaic_0001>

<llo_original>
// kernel: tpu_custom_call.1
$region0: #{tpu_custom_call.1}
  #allocation0 [shape = 'u32[]', space=smem, size = 0x4, offset = 0x4, fixed_abs, tag = 'smem constant byte address 0x4 - core index']
  #allocation1 [shape = 'u32[144,128]{1,0:T(1,128)}', space=vmem, size = 0x12000, scoped, tag = 'internal scratch']
  %s0 = inlined_call_operand.vmem [shape: f32[32,32], index: 0, kind: input, shape index: {}]
  %s1 = inlined_call_operand.vmem [shape: f32[64,32], index: 1, kind: input, shape index: {}]
  %s2 = inlined_call_operand.hbm [shape: f32[2,3,32,32], index: 2, kind: input, shape index: {}]
  %s3 = inlined_call_operand.vmem [shape: f32[2,32,32], index: 3, kind: input, shape index: {}]
  %s4 = inlined_call_operand.vmem [shape: f32[2,2,32], index: 4, kind: input, shape index: {}]
  %s5 = inlined_call_operand.hbm [shape: f32[32,128], index: 5, kind: input, shape index: {}]
  %s6 = inlined_call_operand.vmem [shape: f32[1,128], index: 6, kind: input, shape index: {}]
  %s7 = inlined_call_operand.hbm [shape: f32[32,128], index: 7, kind: output, shape index: {}]
  %s8 = sld [smem:[#allocation0]]
  $region46: #{tpu_custom_call.1} parent=0
    _
  %s10 = ssub.s32 1, %s8
  %s11 = scalar_select 0, %s10, %s8
  $region1: #{tpu_custom_call.1} parent=0
    #allocation2 [shape = 'u8[98304]{0}', space=vmem, size = 0x18000, scoped, tag = 'input window, operand 2, single buffered']
    #allocation3 [shape = 's32[1]{0}', space=sflag, size = 0x4, scoped, tag = 'scoped memory for tpu_custom_call.1']
    #allocation4 [shape = 's32[1]{0}', space=sflag, size = 0x4, scoped, tag = 'scoped memory for tpu_custom_call.1']
    #allocation5 [shape = 'u8[16384]{0}', space=vmem, size = 0x4000, scoped, tag = 'input window, operand 5, single buffered']
    #allocation6 [shape = 's32[1]{0}', space=sflag, size = 0x4, scoped, tag = 'scoped memory for tpu_custom_call.1']
    #allocation7 [shape = 'u8[16384]{0}', space=vmem, size = 0x4000, scoped, tag = 'output window, operand 0, single buffered']
    %12 = vsyncpa [#allocation3], 0
    %13 = vsyncpa [#allocation6], 0
    %14 = vsyncpa [#allocation4], 0
    // Predicated region
    $region2: #{tpu_custom_call.1} parent=1 // pred_check
      _
    $region3: #{tpu_custom_call.1} parent=1 // pred_check_branch
      %16 = sbr.rel (0) target = $region5
    $region4: #{tpu_custom_call.1} parent=1 // pred_region
      _
    $region5: #{tpu_custom_call.1} parent=1 // pred_fallthru
      _
    // Predicated region
    $region6: #{tpu_custom_call.1} parent=1 // pred_check
      _
    $region7: #{tpu_custom_call.1} parent=1 // pred_check_branch
      %18 = sbr.rel (0) target = $region9
    $region8: #{tpu_custom_call.1} parent=1 // pred_region
      _
    $region9: #{tpu_custom_call.1} parent=1 // pred_fallthru
      _
    // Predicated region
    $region10: #{tpu_custom_call.1} parent=1 // pred_check
      _
    $region11: #{tpu_custom_call.1} parent=1 // pred_check_branch
      %20 = sbr.rel (0) target = $region13
    $region12: #{tpu_custom_call.1} parent=1 // pred_region
      %s22 = ssub.s32 3072, 3072
      %23 = vsyncadd [#allocation3], %s22
      %s24 = sshll.u32 [#allocation2], 4
      %s25 = int_to_ptr.vmem [resolvable:$true] %s24
      %30 = dma.hbm_to_vmem [thread:$0]  %s2, 3072, %s25, [#allocation3], 128, 128, 8
    $region13: #{tpu_custom_call.1} parent=1 // pred_fallthru
      _
    // Predicated region
    $region14: #{tpu_custom_call.1} parent=1 // pred_check
      _
    $region15: #{tpu_custom_call.1} parent=1 // pred_check_branch
      %32 = sbr.rel (0) target = $region17
    $region16: #{tpu_custom_call.1} parent=1 // pred_region
      _
    $region17: #{tpu_custom_call.1} parent=1 // pred_fallthru
      _
    // Predicated region
    $region18: #{tpu_custom_call.1} parent=1 // pred_check
      _
    $region19: #{tpu_custom_call.1} parent=1 // pred_check_branch
      %34 = sbr.rel (0) target = $region21
    $region20: #{tpu_custom_call.1} parent=1 // pred_region
      _
    $region21: #{tpu_custom_call.1} parent=1 // pred_fallthru
      _
    // Predicated region
    $region22: #{tpu_custom_call.1} parent=1 // pred_check
      _
    $region23: #{tpu_custom_call.1} parent=1 // pred_check_branch
      %36 = sbr.rel (0) target = $region25
    $region24: #{tpu_custom_call.1} parent=1 // pred_region
      %s38 = ssub.s32 512, 512
      %39 = vsyncadd [#allocation6], %s38
      %s40 = sshll.u32 [#allocation5], 4
      %s41 = int_to_ptr.vmem [resolvable:$true] %s40
      %46 = dma.hbm_to_vmem [thread:$0]  %s5, 512, %s41, [#allocation6], 128, 128, 8
    $region25: #{tpu_custom_call.1} parent=1 // pred_fallthru
      _
    // Predicated region
    $region26: #{tpu_custom_call.1} parent=1 // pred_check
      _
    $region27: #{tpu_custom_call.1} parent=1 // pred_check_branch
      %48 = sbr.rel (0) target = $region29
    $region28: #{tpu_custom_call.1} parent=1 // pred_region
      _
    $region29: #{tpu_custom_call.1} parent=1 // pred_fallthru
      _
    // Predicated region
    $region30: #{tpu_custom_call.1} parent=1 // pred_check
      _
    $region31: #{tpu_custom_call.1} parent=1 // pred_check_branch
      %50 = sbr.rel (0) target = $region33
    $region32: #{tpu_custom_call.1} parent=1 // pred_region
      %51 = dma.done [#allocation3], 3072
    $region33: #{tpu_custom_call.1} parent=1 // pred_fallthru
      _
    // Predicated region
    $region34: #{tpu_custom_call.1} parent=1 // pred_check
      _
    $region35: #{tpu_custom_call.1} parent=1 // pred_check_branch
      %53 = sbr.rel (0) target = $region37
    $region36: #{tpu_custom_call.1} parent=1 // pred_region
      %54 = dma.done [#allocation6], 512
    $region37: #{tpu_custom_call.1} parent=1 // pred_fallthru
      _
    %v55 = vld [vmem:[%s0] sm:$0xff]
    %v56 = vld [vmem:[%s0 + $0x8] sm:$0xff]
    %v57 = vld [vmem:[%s0 + $0x10] sm:$0xff]
    %v58 = vld [vmem:[%s0 + $0x18] sm:$0xff]
    %v59 = vld [vmem:[%s1] sm:$0xff]
    %v60 = vld [vmem:[%s1 + $0x8] sm:$0xff]
    %v61 = vld [vmem:[%s1 + $0x10] sm:$0xff]
    %v62 = vld [vmem:[%s1 + $0x18] sm:$0xff]
    %v63 = vld [vmem:[%s1 + $0x20] sm:$0xff]
    %v64 = vld [vmem:[%s1 + $0x28] sm:$0xff]
    %v65 = vld [vmem:[%s1 + $0x30] sm:$0xff]
    %v66 = vld [vmem:[%s1 + $0x38] sm:$0xff]
    %vm67 = vcmask 261120
    %v68 = vsel %vm67, %v59, 0.0
    %v69 = vsel %vm67, %v60, 0.0
    %v70 = vadd.f32 %v68, %v69
    %v71 = vrot.slane %v70, 4
    %v72 = vadd.f32 %v70, %v71
    %v73 = vrot.slane %v72, 2
    %v74 = vadd.f32 %v72, %v73
    %v75 = vrot.slane %v74, 1
    %v76 = vadd.f32 %v74, %v75
    %v77 = vsel %vm67, %v61, 0.0
    %v78 = vsel %vm67, %v62, 0.0
    %v79 = vadd.f32 %v77, %v78
    %v80 = vrot.slane %v79, 4
    %v81 = vadd.f32 %v79, %v80
    %v82 = vrot.slane %v81, 2
    %v83 = vadd.f32 %v81, %v82
    %v84 = vrot.slane %v83, 1
    %v85 = vadd.f32 %v83, %v84
    %v86 = vsel %vm67, %v63, 0.0
    %v87 = vsel %vm67, %v64, 0.0
    %v88 = vadd.f32 %v86, %v87
    %v89 = vrot.slane %v88, 4
    %v90 = vadd.f32 %v88, %v89
    %v91 = vrot.slane %v90, 2
    %v92 = vadd.f32 %v90, %v91
    %v93 = vrot.slane %v92, 1
    %v94 = vadd.f32 %v92, %v93
    %v95 = vsel %vm67, %v65, 0.0
    %v96 = vsel %vm67, %v66, 0.0
    %v97 = vadd.f32 %v95, %v96
    %v98 = vrot.slane %v97, 4
    %v99 = vadd.f32 %v97, %v98
    %v100 = vrot.slane %v99, 2
    %v101 = vadd.f32 %v99, %v100
    %v102 = vrot.slane %v101, 1
    %v103 = vadd.f32 %v101, %v102
    %v104 = vrcp.pop 16.0
    %v105 = vmul.f32 %v76, %v104
    %v106 = vmul.f32 %v85, %v104
    %v107 = vmul.f32 %v94, %v104
    %v108 = vmul.f32 %v103, %v104
    %v109 = vld [vmem:[#allocation2] sm:$0xff]
    %v110 = vld [vmem:[#allocation2 + $0x8] sm:$0xff]
    %v111 = vld [vmem:[#allocation2 + $0x10] sm:$0xff]
    %v112 = vld [vmem:[#allocation2 + $0x18] sm:$0xff]
    %v113 = vld [vmem:[#allocation2 + $0x20] sm:$0xff]
    %v114 = vld [vmem:[#allocation2 + $0x28] sm:$0xff]
    %v115 = vld [vmem:[#allocation2 + $0x30] sm:$0xff]
    %v116 = vld [vmem:[#allocation2 + $0x38] sm:$0xff]
    %v117 = vld [vmem:[#allocation2 + $0x40] sm:$0xff]
    %v118 = vld [vmem:[#allocation2 + $0x48] sm:$0xff]
    %v119 = vld [vmem:[#allocation2 + $0x50] sm:$0xff]
    %v120 = vld [vmem:[#allocation2 + $0x58] sm:$0xff]
    %v121 = vld [vmem:[%s3] sm:$0xff]
    %v122 = vld [vmem:[%s3 + $0x8] sm:$0xff]
    %v123 = vld [vmem:[%s3 + $0x10] sm:$0xff]
    %v124 = vld [vmem:[%s3 + $0x18] sm:$0xff]
    %v125 = vld [vmem:[%s4] sm:$0x3]
    %v126 = vsel %vm67, %v55, 0.0
    %v127 = vrot.slane %v126, 4
    %v128 = vadd.f32 %v126, %v127
    %v129 = vrot.slane %v128, 2
    %v130 = vadd.f32 %v128, %v129
    %v131 = vrot.slane %v130, 1
    %v132 = vadd.f32 %v130, %v131
    %v133 = vsel %vm67, %v56, 0.0
    %v134 = vrot.slane %v133, 4
    %v135 = vadd.f32 %v133, %v134
    %v136 = vrot.slane %v135, 2
    %v137 = vadd.f32 %v135, %v136
    %v138 = vrot.slane %v137, 1
    %v139 = vadd.f32 %v137, %v138
    %v140 = vsel %vm67, %v57, 0.0
    %v141 = vrot.slane %v140, 4
    %v142 = vadd.f32 %v140, %v141
    %v143 = vrot.slane %v142, 2
    %v144 = vadd.f32 %v142, %v143
    %v145 = vrot.slane %v144, 1
    %v146 = vadd.f32 %v144, %v145
    %v147 = vsel %vm67, %v58, 0.0
    %v148 = vrot.slane %v147, 4
    %v149 = vadd.f32 %v147, %v148
    %v150 = vrot.slane %v149, 2
    %v151 = vadd.f32 %v149, %v150
    %v152 = vrot.slane %v151, 1
    %v153 = vadd.f32 %v151, %v152
    %v154 = vrcp.pop 8.0
    %v155 = vmul.f32 %v132, %v154
    %v156 = vmul.f32 %v139, %v154
    %v157 = vmul.f32 %v146, %v154
    %v158 = vmul.f32 %v153, %v154
    %vm163 = vcmask 1041409
    %v164 = vsel %vm163, %v106, %v105
    %vm165 = vcmask 1042434
    %v166 = vsel %vm165, %v107, %v164
    %vm167 = vcmask 1043459
    %v168 = vsel %vm167, %v108, %v166
    %v169 = vsel %vm67, %v168, 0
    %171 = vmatprep.subr.mxu0 0.0
    %172 = vmatpush1.msra.mxu0 %v113
    %173 = vmatprep.subr.mxu0 0.0
    %174 = vmatpush1.msra.mxu0 %v114
    %175 = vmatprep.subr.mxu0 0.0
    %176 = vmatpush1.msra.mxu0 %v115
    %177 = vmatprep.subr.mxu0 0.0
    %178 = vmatpush1.msra.mxu0 %v116
    %179 = vmatprep.subr.mxu0 0.0
    %180 = vmatpush1.msra.mxu0 0.0
    %181 = vmatprep.subr.mxu0 0.0
    %182 = vmatpush1.msra.mxu0 0.0
    %183 = vmatprep.subr.mxu0 0.0
    %184 = vmatpush1.msra.mxu0 0.0
    %185 = vmatprep.subr.mxu0 0.0
    %186 = vmatpush1.msra.mxu0 0.0
    %187 = vmatprep.subr.mxu0 0.0
    %188 = vmatpush1.msra.mxu0 0.0
    %189 = vmatprep.subr.mxu0 0.0
    %190 = vmatpush1.msra.mxu0 0.0
    %191 = vmatprep.subr.mxu0 0.0
    %192 = vmatpush1.msra.mxu0 0.0
    %193 = vmatprep.subr.mxu0 0.0
    %194 = vmatpush1.msra.mxu0 0.0
    %195 = vmatprep.subr.mxu0 0.0
    %196 = vmatpush1.msra.mxu0 0.0
    %197 = vmatprep.subr.mxu0 0.0
    %198 = vmatpush1.msra.mxu0 0.0
    %199 = vmatprep.subr.mxu0 0.0
    %200 = vmatpush1.msra.mxu0 0.0
    %201 = vmatprep.subr.mxu0 0.0
    %202 = vmatpush1.msra.mxu0 0.0
    %203 = vmatprep.subr.mxu0 0.0
    %204 = vmatpush1.msra.mxu0 0.0
    %205 = vmatprep.subr.mxu0 0.0
    %206 = vmatpush1.msra.mxu0 0.0
    %207 = vmatprep.subr.mxu0 0.0
    %208 = vmatpush1.msra.mxu0 0.0
    %209 = vmatprep.subr.mxu0 0.0
    %210 = vmatpush1.msra.mxu0 0.0
    %211 = vmatprep.subr.mxu0 0.0
    %212 = vmatpush1.msra.mxu0 0.0
    %213 = vmatprep.subr.mxu0 0.0
    %214 = vmatpush1.msra.mxu0 0.0
    %215 = vmatprep.subr.mxu0 0.0
    %216 = vmatpush1.msra.mxu0 0.0
    %217 = vmatprep.subr.mxu0 0.0
    %218 = vmatpush1.msra.mxu0 0.0
    %219 = vmatprep.subr.mxu0 0.0
    %220 = vmatpush1.msra.mxu0 0.0
    %221 = vmatprep.subr.mxu0 0.0
    %222 = vmatpush1.msra.mxu0 0.0
    %223 = vmatprep.subr.mxu0 0.0
    %224 = vmatpush1.msra.mxu0 0.0
    %225 = vmatprep.subr.mxu0 0.0
    %226 = vmatpush1.msra.mxu0 0.0
    %227 = vmatprep.subr.mxu0 0.0
    %228 = vmatpush1.msra.mxu0 0.0
    %229 = vmatprep.subr.mxu0 0.0
    %230 = vmatpush1.msra.mxu0 0.0
    %231 = vmatprep.subr.mxu0 0.0
    %232 = vmatpush1.msra.mxu0 0.0
    %233 = vmatprep.subr.mxu0 0.0
    %234 = vmatpush1.msra.mxu0 0.0
    %235 = vmatprep.mubr.f32.mxu0 0.0
    %236 = vmatmul.mubr.f32.gmra.mrb[0].mxu0 %v169
    %v237 = vpop.f32.mrb[0].mxu0
    %v238 = vadd.f32 0.0, %v237
    %v239 = vpop.f32.mrb[0].mxu0
    %240 = vdwg.mxu0
    %v245 = vsel %vm163, %v156, %v155
    %v246 = vsel %vm165, %v157, %v245
    %v247 = vsel %vm167, %v158, %v246
    %v248 = vsel %vm67, %v247, 0
    %250 = vmatprep.subr.mxu0 0.0
    %251 = vmatpush1.msra.mxu0 %v109
    %252 = vmatprep.subr.mxu0 0.0
    %253 = vmatpush1.msra.mxu0 %v110
    %254 = vmatprep.subr.mxu0 0.0
    %255 = vmatpush1.msra.mxu0 %v111
    %256 = vmatprep.subr.mxu0 0.0
    %257 = vmatpush1.msra.mxu0 %v112
    %258 = vmatprep.subr.mxu0 0.0
    %259 = vmatpush1.msra.mxu0 0.0
    %260 = vmatprep.subr.mxu0 0.0
    %261 = vmatpush1.msra.mxu0 0.0
    %262 = vmatprep.subr.mxu0 0.0
    %263 = vmatpush1.msra.mxu0 0.0
    %264 = vmatprep.subr.mxu0 0.0
    %265 = vmatpush1.msra.mxu0 0.0
    %266 = vmatprep.subr.mxu0 0.0
    %267 = vmatpush1.msra.mxu0 0.0
    %268 = vmatprep.subr.mxu0 0.0
    %269 = vmatpush1.msra.mxu0 0.0
    %270 = vmatprep.subr.mxu0 0.0
    %271 = vmatpush1.msra.mxu0 0.0
    %272 = vmatprep.subr.mxu0 0.0
    %273 = vmatpush1.msra.mxu0 0.0
    %274 = vmatprep.subr.mxu0 0.0
    %275 = vmatpush1.msra.mxu0 0.0
    %276 = vmatprep.subr.mxu0 0.0
    %277 = vmatpush1.msra.mxu0 0.0
    %278 = vmatprep.subr.mxu0 0.0
    %279 = vmatpush1.msra.mxu0 0.0
    %280 = vmatprep.subr.mxu0 0.0
    %281 = vmatpush1.msra.mxu0 0.0
    %282 = vmatprep.subr.mxu0 0.0
    %283 = vmatpush1.msra.mxu0 0.0
    %284 = vmatprep.subr.mxu0 0.0
    %285 = vmatpush1.msra.mxu0 0.0
    %286 = vmatprep.subr.mxu0 0.0
    %287 = vmatpush1.msra.mxu0 0.0
    %288 = vmatprep.subr.mxu0 0.0
    %289 = vmatpush1.msra.mxu0 0.0
    %290 = vmatprep.subr.mxu0 0.0
    %291 = vmatpush1.msra.mxu0 0.0
    %292 = vmatprep.subr.mxu0 0.0
    %293 = vmatpush1.msra.mxu0 0.0
    %294 = vmatprep.subr.mxu0 0.0
    %295 = vmatpush1.msra.mxu0 0.0
    %296 = vmatprep.subr.mxu0 0.0
    %297 = vmatpush1.msra.mxu0 0.0
    %298 = vmatprep.subr.mxu0 0.0
    %299 = vmatpush1.msra.mxu0 0.0
    %300 = vmatprep.subr.mxu0 0.0
    %301 = vmatpush1.msra.mxu0 0.0
    %302 = vmatprep.subr.mxu0 0.0
    %303 = vmatpush1.msra.mxu0 0.0
    %304 = vmatprep.subr.mxu0 0.0
    %305 = vmatpush1.msra.mxu0 0.0
    %306 = vmatprep.subr.mxu0 0.0
    %307 = vmatpush1.msra.mxu0 0.0
    %308 = vmatprep.subr.mxu0 0.0
    %309 = vmatpush1.msra.mxu0 0.0
    %310 = vmatprep.subr.mxu0 0.0
    %311 = vmatpush1.msra.mxu0 0.0
    %312 = vmatprep.subr.mxu0 0.0
    %313 = vmatpush1.msra.mxu0 0.0
    %314 = vmatprep.mubr.f32.mxu0 0.0
    %315 = vmatmul.mubr.f32.gmra.mrb[0].mxu0 %v248
    %v316 = vpop.f32.mrb[0].mxu0
    %v317 = vadd.f32 %v238, %v316
    %v318 = vpop.f32.mrb[0].mxu0
    %319 = vdwg.mxu0
    %v320 = vlaneseq
    %v321 = vshrl.u32 %v320, 7
    %v322 = vsub.s32 0, %v321
    %v323 = vrot.slane %v125, %v322
    %v324 = vadd.f32 %v317, %v323
    %v326 = vsel %vm67, %v55, 0
    %v329 = vsel %vm67, %v56, 0
    %v332 = vsel %vm67, %v57, 0
    %v335 = vsel %vm67, %v58, 0
    %337 = vmatprep.subr.mxu0 0.0
    %338 = vmatpush1.msra.mxu0 %v117
    %339 = vmatprep.subr.mxu0 0.0
    %340 = vmatpush1.msra.mxu0 %v118
    %341 = vmatprep.subr.mxu0 0.0
    %342 = vmatpush1.msra.mxu0 %v119
    %343 = vmatprep.subr.mxu0 0.0
    %344 = vmatpush1.msra.mxu0 %v120
    %345 = vmatprep.subr.mxu0 0.0
    %346 = vmatpush1.msra.mxu0 0.0
    %347 = vmatprep.subr.mxu0 0.0
    %348 = vmatpush1.msra.mxu0 0.0
    %349 = vmatprep.subr.mxu0 0.0
    %350 = vmatpush1.msra.mxu0 0.0
    %351 = vmatprep.subr.mxu0 0.0
    %352 = vmatpush1.msra.mxu0 0.0
    %353 = vmatprep.subr.mxu0 0.0
    %354 = vmatpush1.msra.mxu0 0.0
    %355 = vmatprep.subr.mxu0 0.0
    %356 = vmatpush1.msra.mxu0 0.0
    %357 = vmatprep.subr.mxu0 0.0
    %358 = vmatpush1.msra.mxu0 0.0
    %359 = vmatprep.subr.mxu0 0.0
    %360 = vmatpush1.msra.mxu0 0.0
    %361 = vmatprep.subr.mxu0 0.0
    %362 = vmatpush1.msra.mxu0 0.0
    %363 = vmatprep.subr.mxu0 0.0
    %364 = vmatpush1.msra.mxu0 0.0
    %365 = vmatprep.subr.mxu0 0.0
    %366 = vmatpush1.msra.mxu0 0.0
    %367 = vmatprep.subr.mxu0 0.0
    %368 = vmatpush1.msra.mxu0 0.0
    %369 = vmatprep.subr.mxu0 0.0
    %370 = vmatpush1.msra.mxu0 0.0
    %371 = vmatprep.subr.mxu0 0.0
    %372 = vmatpush1.msra.mxu0 0.0
    %373 = vmatprep.subr.mxu0 0.0
    %374 = vmatpush1.msra.mxu0 0.0
    %375 = vmatprep.subr.mxu0 0.0
    %376 = vmatpush1.msra.mxu0 0.0
    %377 = vmatprep.subr.mxu0 0.0
    %378 = vmatpush1.msra.mxu0 0.0
    %379 = vmatprep.subr.mxu0 0.0
    %380 = vmatpush1.msra.mxu0 0.0
    %381 = vmatprep.subr.mxu0 0.0
    %382 = vmatpush1.msra.mxu0 0.0
    %383 = vmatprep.subr.mxu0 0.0
    %384 = vmatpush1.msra.mxu0 0.0
    %385 = vmatprep.subr.mxu0 0.0
    %386 = vmatpush1.msra.mxu0 0.0
    %387 = vmatprep.subr.mxu0 0.0
    %388 = vmatpush1.msra.mxu0 0.0
    %389 = vmatprep.subr.mxu0 0.0
    %390 = vmatpush1.msra.mxu0 0.0
    %391 = vmatprep.subr.mxu0 0.0
    %392 = vmatpush1.msra.mxu0 0.0
    %393 = vmatprep.subr.mxu0 0.0
    %394 = vmatpush1.msra.mxu0 0.0
    %395 = vmatprep.subr.mxu0 0.0
    %396 = vmatpush1.msra.mxu0 0.0
    %397 = vmatprep.subr.mxu0 0.0
    %398 = vmatpush1.msra.mxu0 0.0
    %399 = vmatprep.subr.mxu0 0.0
    %400 = vmatpush1.msra.mxu0 0.0
    %401 = vmatprep.mubr.f32.mxu0 0.0
    %402 = vmatmul.mubr.f32.gmra.mrb[0].mxu0 %v326
    %v403 = vpop.f32.mrb[0].mxu0
    %v404 = vadd.f32 0.0, %v403
    %v405 = vpop.f32.mrb[0].mxu0
    %406 = vmatprep.mubr.f32.mxu0 0.0
    %407 = vmatmul.mubr.f32.gmra.mrb[0].mxu0 %v329
    %v408 = vpop.f32.mrb[0].mxu0
    %v409 = vadd.f32 0.0, %v408
    %v410 = vpop.f32.mrb[0].mxu0
    %411 = vmatprep.mubr.f32.mxu0 0.0
    %412 = vmatmul.mubr.f32.gmra.mrb[0].mxu0 %v332
    %v413 = vpop.f32.mrb[0].mxu0
    %v414 = vadd.f32 0.0, %v413
    %v415 = vpop.f32.mrb[0].mxu0
    %416 = vmatprep.mubr.f32.mxu0 0.0
    %417 = vmatmul.mubr.f32.gmra.mrb[0].mxu0 %v335
    %v418 = vpop.f32.mrb[0].mxu0
    %v419 = vadd.f32 0.0, %v418
    %v420 = vpop.f32.mrb[0].mxu0
    %421 = vdwg.mxu0
    %v424 = vunpack.c.l.s4 1966171168
    %v425 = vunpack.c.0.s8 %v424
    %v426 = vlaneseq
    %v427 = vshrl.u32 %v426, 7
    %v428 = vsub.s32 %v425, %v427
    %v429 = vrot.slane %v324, %v428
    %v430 = vcombine.high %v429, %v429
    %v432 = vunpack.c.l.s4 1966171168
    %v433 = vunpack.c.0.s8 %v432
    %v434 = vlaneseq
    %v435 = vshrl.u32 %v434, 7
    %v436 = vsub.s32 %v433, %v435
    %v437 = vrot.slane %v429, %v436
    %v439 = vunpack.c.l.s4 1966171168
    %v440 = vunpack.c.0.s8 %v439
    %v441 = vlaneseq
    %v442 = vshrl.u32 %v441, 7
    %v443 = vsub.s32 %v440, %v442
    %v444 = vrot.slane %v430, %v443
    %v445 = vcombine.high %v437, %v437
    %v446 = vcombine.high %v444, %v444
    %v447 = vlaneseq
    %v448 = vshrl.u32 %v447, 7
    %v449 = vsub.s32 0, %v448
    %v450 = vrot.slane %v437, %v449
    %v451 = vlaneseq
    %v452 = vshrl.u32 %v451, 7
    %v453 = vsub.s32 0, %v452
    %v454 = vrot.slane %v444, %v453
    %v455 = vlaneseq
    %v456 = vshrl.u32 %v455, 7
    %v457 = vsub.s32 0, %v456
    %v458 = vrot.slane %v445, %v457
    %v459 = vlaneseq
    %v460 = vshrl.u32 %v459, 7
    %v461 = vsub.s32 0, %v460
    %v462 = vrot.slane %v446, %v461
    %v467 = vadd.f32 %v404, %v450
    %v468 = vadd.f32 %v409, %v454
    %v469 = vadd.f32 %v414, %v458
    %v470 = vadd.f32 %v419, %v462
    %vm471 = vcmp.ge.f32.partialorder %v467, 0.0
    %vm472 = vcmp.ge.f32.partialorder %v468, 0.0
    %vm473 = vcmp.ge.f32.partialorder %v469, 0.0
    %vm474 = vcmp.ge.f32.partialorder %v470, 0.0
    %v475 = vmul.f32 %v467, 0.01
    %v476 = vmul.f32 %v468, 0.01
    %v477 = vmul.f32 %v469, 0.01
    %v478 = vmul.f32 %v470, 0.01
    %v479 = vsel %vm471, %v467, %v475
    %v480 = vsel %vm472, %v468, %v476
    %v481 = vsel %vm473, %v469, %v477
    %v482 = vsel %vm474, %v470, %v478
    %v483 = vlaneseq
    %v484 = vshrl.u32 %v483, 7
    %v485 = vsub.s32 1, %v484
    %v486 = vrot.slane %v125, %v485
    %487 = vmatprep.subr.mxu0 0.0
    %488 = vmatpush1.msra.mxu0 %v121
    %489 = vmatprep.subr.mxu0 0.0
    %490 = vmatpush1.msra.mxu0 %v122
    %491 = vmatprep.subr.mxu0 0.0
    %492 = vmatpush1.msra.mxu0 %v123
    %493 = vmatprep.subr.mxu0 0.0
    %494 = vmatpush1.msra.mxu0 %v124
    %495 = vmatprep.subr.mxu0 0.0
    %496 = vmatpush1.msra.mxu0 0.0
    %497 = vmatprep.subr.mxu0 0.0
    %498 = vmatpush1.msra.mxu0 0.0
    %499 = vmatprep.subr.mxu0 0.0
    %500 = vmatpush1.msra.mxu0 0.0
    %501 = vmatprep.subr.mxu0 0.0
    %502 = vmatpush1.msra.mxu0 0.0
    %503 = vmatprep.subr.mxu0 0.0
    %504 = vmatpush1.msra.mxu0 0.0
    %505 = vmatprep.subr.mxu0 0.0
    %506 = vmatpush1.msra.mxu0 0.0
    %507 = vmatprep.subr.mxu0 0.0
    %508 = vmatpush1.msra.mxu0 0.0
    %509 = vmatprep.subr.mxu0 0.0
    %510 = vmatpush1.msra.mxu0 0.0
    %511 = vmatprep.subr.mxu0 0.0
    %512 = vmatpush1.msra.mxu0 0.0
    %513 = vmatprep.subr.mxu0 0.0
    %514 = vmatpush1.msra.mxu0 0.0
    %515 = vmatprep.subr.mxu0 0.0
    %516 = vmatpush1.msra.mxu0 0.0
    %517 = vmatprep.subr.mxu0 0.0
    %518 = vmatpush1.msra.mxu0 0.0
    %519 = vmatprep.subr.mxu0 0.0
    %520 = vmatpush1.msra.mxu0 0.0
    %521 = vmatprep.subr.mxu0 0.0
    %522 = vmatpush1.msra.mxu0 0.0
    %523 = vmatprep.subr.mxu0 0.0
    %524 = vmatpush1.msra.mxu0 0.0
    %525 = vmatprep.subr.mxu0 0.0
    %526 = vmatpush1.msra.mxu0 0.0
    %527 = vmatprep.subr.mxu0 0.0
    %528 = vmatpush1.msra.mxu0 0.0
    %529 = vmatprep.subr.mxu0 0.0
    %530 = vmatpush1.msra.mxu0 0.0
    %531 = vmatprep.subr.mxu0 0.0
    %532 = vmatpush1.msra.mxu0 0.0
    %533 = vmatprep.subr.mxu0 0.0
    %534 = vmatpush1.msra.mxu0 0.0
    %535 = vmatprep.subr.mxu0 0.0
    %536 = vmatpush1.msra.mxu0 0.0
    %537 = vmatprep.subr.mxu0 0.0
    %538 = vmatpush1.msra.mxu0 0.0
    %539 = vmatprep.subr.mxu0 0.0
    %540 = vmatpush1.msra.mxu0 0.0
    %541 = vmatprep.subr.mxu0 0.0
    %542 = vmatpush1.msra.mxu0 0.0
    %543 = vmatprep.subr.mxu0 0.0
    %544 = vmatpush1.msra.mxu0 0.0
    %545 = vmatprep.subr.mxu0 0.0
    %546 = vmatpush1.msra.mxu0 0.0
    %547 = vmatprep.subr.mxu0 0.0
    %548 = vmatpush1.msra.mxu0 0.0
    %549 = vmatprep.subr.mxu0 0.0
    %550 = vmatpush1.msra.mxu0 0.0
    %551 = vmatprep.mubr.f32.mxu0 0.0
    %552 = vmatmul.mubr.f32.gmra.mrb[0].mxu0 %v169
    %v553 = vpop.f32.mrb[0].mxu0
    %v554 = vadd.f32 %v486, %v553
    %v555 = vpop.f32.mrb[0].mxu0
    %556 = vdwg.mxu0
    %vm557 = vcmp.ge.f32.partialorder %v554, 0.0
    %v558 = vmul.f32 %v554, 0.01
    %v559 = vsel %vm557, %v554, %v558
    %s560 = scalar_lea.vmem [#allocation2], 96
    %v561 = vld [vmem:[%s560] sm:$0xff]
    %v562 = vld [vmem:[%s560 + $0x8] sm:$0xff]
    %v563 = vld [vmem:[%s560 + $0x10] sm:$0xff]
    %v564 = vld [vmem:[%s560 + $0x18] sm:$0xff]
    %v565 = vld [vmem:[%s560 + $0x20] sm:$0xff]
    %v566 = vld [vmem:[%s560 + $0x28] sm:$0xff]
    %v567 = vld [vmem:[%s560 + $0x30] sm:$0xff]
    %v568 = vld [vmem:[%s560 + $0x38] sm:$0xff]
    %v569 = vld [vmem:[%s560 + $0x40] sm:$0xff]
    %v570 = vld [vmem:[%s560 + $0x48] sm:$0xff]
    %v571 = vld [vmem:[%s560 + $0x50] sm:$0xff]
    %v572 = vld [vmem:[%s560 + $0x58] sm:$0xff]
    %s573 = scalar_lea.vmem %s4, 2
    %v574 = vld [vmem:[%s573] sm:$0x3]
    %v575 = vsel %vm67, %v479, 0.0
    %v576 = vrot.slane %v575, 4
    %v577 = vadd.f32 %v575, %v576
    %v578 = vrot.slane %v577, 2
    %v579 = vadd.f32 %v577, %v578
    %v580 = vrot.slane %v579, 1
    %v581 = vadd.f32 %v579, %v580
    %v582 = vsel %vm67, %v480, 0.0
    %v583 = vrot.slane %v582, 4
    %v584 = vadd.f32 %v582, %v583
    %v585 = vrot.slane %v584, 2
    %v586 = vadd.f32 %v584, %v585
    %v587 = vrot.slane %v586, 1
    %v588 = vadd.f32 %v586, %v587
    %v589 = vsel %vm67, %v481, 0.0
    %v590 = vrot.slane %v589, 4
    %v591 = vadd.f32 %v589, %v590
    %v592 = vrot.slane %v591, 2
    %v593 = vadd.f32 %v591, %v592
    %v594 = vrot.slane %v593, 1
    %v595 = vadd.f32 %v593, %v594
    %v596 = vsel %vm67, %v482, 0.0
    %v597 = vrot.slane %v596, 4
    %v598 = vadd.f32 %v596, %v597
    %v599 = vrot.slane %v598, 2
    %v600 = vadd.f32 %v598, %v599
    %v601 = vrot.slane %v600, 1
    %v602 = vadd.f32 %v600, %v601
    %v603 = vmul.f32 %v581, %v154
    %v604 = vmul.f32 %v588, %v154
    %v605 = vmul.f32 %v595, %v154
    %v606 = vmul.f32 %v602, %v154
    %v608 = vsel %vm67, %v559, 0
    %610 = vmatprep.subr.mxu0 0.0
    %611 = vmatpush1.msra.mxu0 %v565
    %612 = vmatprep.subr.mxu0 0.0
    %613 = vmatpush1.msra.mxu0 %v566
    %614 = vmatprep.subr.mxu0 0.0
    %615 = vmatpush1.msra.mxu0 %v567
    %616 = vmatprep.subr.mxu0 0.0
    %617 = vmatpush1.msra.mxu0 %v568
    %618 = vmatprep.subr.mxu0 0.0
    %619 = vmatpush1.msra.mxu0 0.0
    %620 = vmatprep.subr.mxu0 0.0
    %621 = vmatpush1.msra.mxu0 0.0
    %622 = vmatprep.subr.mxu0 0.0
    %623 = vmatpush1.msra.mxu0 0.0
    %624 = vmatprep.subr.mxu0 0.0
    %625 = vmatpush1.msra.mxu0 0.0
    %626 = vmatprep.subr.mxu0 0.0
    %627 = vmatpush1.msra.mxu0 0.0
    %628 = vmatprep.subr.mxu0 0.0
    %629 = vmatpush1.msra.mxu0 0.0
    %630 = vmatprep.subr.mxu0 0.0
    %631 = vmatpush1.msra.mxu0 0.0
    %632 = vmatprep.subr.mxu0 0.0
    %633 = vmatpush1.msra.mxu0 0.0
    %634 = vmatprep.subr.mxu0 0.0
    %635 = vmatpush1.msra.mxu0 0.0
    %636 = vmatprep.subr.mxu0 0.0
    %637 = vmatpush1.msra.mxu0 0.0
    %638 = vmatprep.subr.mxu0 0.0
    %639 = vmatpush1.msra.mxu0 0.0
    %640 = vmatprep.subr.mxu0 0.0
    %641 = vmatpush1.msra.mxu0 0.0
    %642 = vmatprep.subr.mxu0 0.0
    %643 = vmatpush1.msra.mxu0 0.0
    %644 = vmatprep.subr.mxu0 0.0
    %645 = vmatpush1.msra.mxu0 0.0
    %646 = vmatprep.subr.mxu0 0.0
    %647 = vmatpush1.msra.mxu0 0.0
    %648 = vmatprep.subr.mxu0 0.0
    %649 = vmatpush1.msra.mxu0 0.0
    %650 = vmatprep.subr.mxu0 0.0
    %651 = vmatpush1.msra.mxu0 0.0
    %652 = vmatprep.subr.mxu0 0.0
    %653 = vmatpush1.msra.mxu0 0.0
    %654 = vmatprep.subr.mxu0 0.0
    %655 = vmatpush1.msra.mxu0 0.0
    %656 = vmatprep.subr.mxu0 0.0
    %657 = vmatpush1.msra.mxu0 0.0
    %658 = vmatprep.subr.mxu0 0.0
    %659 = vmatpush1.msra.mxu0 0.0
    %660 = vmatprep.subr.mxu0 0.0
    %661 = vmatpush1.msra.mxu0 0.0
    %662 = vmatprep.subr.mxu0 0.0
    %663 = vmatpush1.msra.mxu0 0.0
    %664 = vmatprep.subr.mxu0 0.0
    %665 = vmatpush1.msra.mxu0 0.0
    %666 = vmatprep.subr.mxu0 0.0
    %667 = vmatpush1.msra.mxu0 0.0
    %668 = vmatprep.subr.mxu0 0.0
    %669 = vmatpush1.msra.mxu0 0.0
    %670 = vmatprep.subr.mxu0 0.0
    %671 = vmatpush1.msra.mxu0 0.0
    %672 = vmatprep.subr.mxu0 0.0
    %673 = vmatpush1.msra.mxu0 0.0
    %674 = vmatprep.mubr.f32.mxu0 0.0
    %675 = vmatmul.mubr.f32.gmra.mrb[0].mxu0 %v608
    %v676 = vpop.f32.mrb[0].mxu0
    %v677 = vadd.f32 0.0, %v676
    %v678 = vpop.f32.mrb[0].mxu0
    %679 = vdwg.mxu0
    %v684 = vsel %vm163, %v604, %v603
    %v685 = vsel %vm165, %v605, %v684
    %v686 = vsel %vm167, %v606, %v685
    %v687 = vsel %vm67, %v686, 0
    %689 = vmatprep.subr.mxu0 0.0
    %690 = vmatpush1.msra.mxu0 %v561
    %691 = vmatprep.subr.mxu0 0.0
    %692 = vmatpush1.msra.mxu0 %v562
    %693 = vmatprep.subr.mxu0 0.0
    %694 = vmatpush1.msra.mxu0 %v563
    %695 = vmatprep.subr.mxu0 0.0
    %696 = vmatpush1.msra.mxu0 %v564
    %697 = vmatprep.subr.mxu0 0.0
    %698 = vmatpush1.msra.mxu0 0.0
    %699 = vmatprep.subr.mxu0 0.0
    %700 = vmatpush1.msra.mxu0 0.0
    %701 = vmatprep.subr.mxu0 0.0
    %702 = vmatpush1.msra.mxu0 0.0
    %703 = vmatprep.subr.mxu0 0.0
    %704 = vmatpush1.msra.mxu0 0.0
    %705 = vmatprep.subr.mxu0 0.0
    %706 = vmatpush1.msra.mxu0 0.0
    %707 = vmatprep.subr.mxu0 0.0
    %708 = vmatpush1.msra.mxu0 0.0
    %709 = vmatprep.subr.mxu0 0.0
    %710 = vmatpush1.msra.mxu0 0.0
    %711 = vmatprep.subr.mxu0 0.0
    %712 = vmatpush1.msra.mxu0 0.0
    %713 = vmatprep.subr.mxu0 0.0
    %714 = vmatpush1.msra.mxu0 0.0
    %715 = vmatprep.subr.mxu0 0.0
    %716 = vmatpush1.msra.mxu0 0.0
    %717 = vmatprep.subr.mxu0 0.0
    %718 = vmatpush1.msra.mxu0 0.0
    %719 = vmatprep.subr.mxu0 0.0
    %720 = vmatpush1.msra.mxu0 0.0
    %721 = vmatprep.subr.mxu0 0.0
    %722 = vmatpush1.msra.mxu0 0.0
    %723 = vmatprep.subr.mxu0 0.0
    %724 = vmatpush1.msra.mxu0 0.0
    %725 = vmatprep.subr.mxu0 0.0
    %726 = vmatpush1.msra.mxu0 0.0
    %727 = vmatprep.subr.mxu0 0.0
    %728 = vmatpush1.msra.mxu0 0.0
    %729 = vmatprep.subr.mxu0 0.0
    %730 = vmatpush1.msra.mxu0 0.0
    %731 = vmatprep.subr.mxu0 0.0
    %732 = vmatpush1.msra.mxu0 0.0
    %733 = vmatprep.subr.mxu0 0.0
    %734 = vmatpush1.msra.mxu0 0.0
    %735 = vmatprep.subr.mxu0 0.0
    %736 = vmatpush1.msra.mxu0 0.0
    %737 = vmatprep.subr.mxu0 0.0
    %738 = vmatpush1.msra.mxu0 0.0
    %739 = vmatprep.subr.mxu0 0.0
    %740 = vmatpush1.msra.mxu0 0.0
    %741 = vmatprep.subr.mxu0 0.0
    %742 = vmatpush1.msra.mxu0 0.0
    %743 = vmatprep.subr.mxu0 0.0
    %744 = vmatpush1.msra.mxu0 0.0
    %745 = vmatprep.subr.mxu0 0.0
    %746 = vmatpush1.msra.mxu0 0.0
    %747 = vmatprep.subr.mxu0 0.0
    %748 = vmatpush1.msra.mxu0 0.0
    %749 = vmatprep.subr.mxu0 0.0
    %750 = vmatpush1.msra.mxu0 0.0
    %751 = vmatprep.subr.mxu0 0.0
    %752 = vmatpush1.msra.mxu0 0.0
    %753 = vmatprep.mubr.f32.mxu0 0.0
    %754 = vmatmul.mubr.f32.gmra.mrb[0].mxu0 %v687
    %v755 = vpop.f32.mrb[0].mxu0
    %v756 = vadd.f32 %v677, %v755
    %v757 = vpop.f32.mrb[0].mxu0
    %758 = vdwg.mxu0
    %v759 = vlaneseq
    %v760 = vshrl.u32 %v759, 7
    %v761 = vsub.s32 0, %v760
    %v762 = vrot.slane %v574, %v761
    %v763 = vadd.f32 %v756, %v762
    %v765 = vsel %vm67, %v479, 0
    %v768 = vsel %vm67, %v480, 0
    %v771 = vsel %vm67, %v481, 0
    %v774 = vsel %vm67, %v482, 0
    %776 = vmatprep.subr.mxu0 0.0
    %777 = vmatpush1.msra.mxu0 %v569
    %778 = vmatprep.subr.mxu0 0.0
    %779 = vmatpush1.msra.mxu0 %v570
    %780 = vmatprep.subr.mxu0 0.0
    %781 = vmatpush1.msra.mxu0 %v571
    %782 = vmatprep.subr.mxu0 0.0
    %783 = vmatpush1.msra.mxu0 %v572
    %784 = vmatprep.subr.mxu0 0.0
    %785 = vmatpush1.msra.mxu0 0.0
    %786 = vmatprep.subr.mxu0 0.0
    %787 = vmatpush1.msra.mxu0 0.0
    %788 = vmatprep.subr.mxu0 0.0
    %789 = vmatpush1.msra.mxu0 0.0
    %790 = vmatprep.subr.mxu0 0.0
    %791 = vmatpush1.msra.mxu0 0.0
    %792 = vmatprep.subr.mxu0 0.0
    %793 = vmatpush1.msra.mxu0 0.0
    %794 = vmatprep.subr.mxu0 0.0
    %795 = vmatpush1.msra.mxu0 0.0
    %796 = vmatprep.subr.mxu0 0.0
    %797 = vmatpush1.msra.mxu0 0.0
    %798 = vmatprep.subr.mxu0 0.0
    %799 = vmatpush1.msra.mxu0 0.0
    %800 = vmatprep.subr.mxu0 0.0
    %801 = vmatpush1.msra.mxu0 0.0
    %802 = vmatprep.subr.mxu0 0.0
    %803 = vmatpush1.msra.mxu0 0.0
    %804 = vmatprep.subr.mxu0 0.0
    %805 = vmatpush1.msra.mxu0 0.0
    %806 = vmatprep.subr.mxu0 0.0
    %807 = vmatpush1.msra.mxu0 0.0
    %808 = vmatprep.subr.mxu0 0.0
    %809 = vmatpush1.msra.mxu0 0.0
    %810 = vmatprep.subr.mxu0 0.0
    %811 = vmatpush1.msra.mxu0 0.0
    %812 = vmatprep.subr.mxu0 0.0
    %813 = vmatpush1.msra.mxu0 0.0
    %814 = vmatprep.subr.mxu0 0.0
    %815 = vmatpush1.msra.mxu0 0.0
    %816 = vmatprep.subr.mxu0 0.0
    %817 = vmatpush1.msra.mxu0 0.0
    %818 = vmatprep.subr.mxu0 0.0
    %819 = vmatpush1.msra.mxu0 0.0
    %820 = vmatprep.subr.mxu0 0.0
    %821 = vmatpush1.msra.mxu0 0.0
    %822 = vmatprep.subr.mxu0 0.0
    %823 = vmatpush1.msra.mxu0 0.0
    %824 = vmatprep.subr.mxu0 0.0
    %825 = vmatpush1.msra.mxu0 0.0
    %826 = vmatprep.subr.mxu0 0.0
    %827 = vmatpush1.msra.mxu0 0.0
    %828 = vmatprep.subr.mxu0 0.0
    %829 = vmatpush1.msra.mxu0 0.0
    %830 = vmatprep.subr.mxu0 0.0
    %831 = vmatpush1.msra.mxu0 0.0
    %832 = vmatprep.subr.mxu0 0.0
    %833 = vmatpush1.msra.mxu0 0.0
    %834 = vmatprep.subr.mxu0 0.0
    %835 = vmatpush1.msra.mxu0 0.0
    %836 = vmatprep.subr.mxu0 0.0
    %837 = vmatpush1.msra.mxu0 0.0
    %838 = vmatprep.subr.mxu0 0.0
    %839 = vmatpush1.msra.mxu0 0.0
    %840 = vmatprep.mubr.f32.mxu0 0.0
    %841 = vmatmul.mubr.f32.gmra.mrb[0].mxu0 %v765
    %v842 = vpop.f32.mrb[0].mxu0
    %v843 = vadd.f32 0.0, %v842
    %v844 = vpop.f32.mrb[0].mxu0
    %845 = vmatprep.mubr.f32.mxu0 0.0
    %846 = vmatmul.mubr.f32.gmra.mrb[0].mxu0 %v768
    %v847 = vpop.f32.mrb[0].mxu0
    %v848 = vadd.f32 0.0, %v847
    %v849 = vpop.f32.mrb[0].mxu0
    %850 = vmatprep.mubr.f32.mxu0 0.0
    %851 = vmatmul.mubr.f32.gmra.mrb[0].mxu0 %v771
    %v852 = vpop.f32.mrb[0].mxu0
    %v853 = vadd.f32 0.0, %v852
    %v854 = vpop.f32.mrb[0].mxu0
    %855 = vmatprep.mubr.f32.mxu0 0.0
    %856 = vmatmul.mubr.f32.gmra.mrb[0].mxu0 %v774
    %v857 = vpop.f32.mrb[0].mxu0
    %v858 = vadd.f32 0.0, %v857
    %v859 = vpop.f32.mrb[0].mxu0
    %860 = vdwg.mxu0
    %v863 = vunpack.c.l.s4 1966171168
    %v864 = vunpack.c.0.s8 %v863
    %v865 = vlaneseq
    %v866 = vshrl.u32 %v865, 7
    %v867 = vsub.s32 %v864, %v866
    %v868 = vrot.slane %v763, %v867
    %v869 = vcombine.high %v868, %v868
    %v871 = vunpack.c.l.s4 1966171168
    %v872 = vunpack.c.0.s8 %v871
    %v873 = vlaneseq
    %v874 = vshrl.u32 %v873, 7
    %v875 = vsub.s32 %v872, %v874
    %v876 = vrot.slane %v868, %v875
    %v878 = vunpack.c.l.s4 1966171168
    %v879 = vunpack.c.0.s8 %v878
    %v880 = vlaneseq
    %v881 = vshrl.u32 %v880, 7
    %v882 = vsub.s32 %v879, %v881
    %v883 = vrot.slane %v869, %v882
    %v884 = vcombine.high %v876, %v876
    %v885 = vcombine.high %v883, %v883
    %v886 = vlaneseq
    %v887 = vshrl.u32 %v886, 7
    %v888 = vsub.s32 0, %v887
    %v889 = vrot.slane %v876, %v888
    %v890 = vlaneseq
    %v891 = vshrl.u32 %v890, 7
    %v892 = vsub.s32 0, %v891
    %v893 = vrot.slane %v883, %v892
    %v894 = vlaneseq
    %v895 = vshrl.u32 %v894, 7
    %v896 = vsub.s32 0, %v895
    %v897 = vrot.slane %v884, %v896
    %v898 = vlaneseq
    %v899 = vshrl.u32 %v898, 7
    %v900 = vsub.s32 0, %v899
    %v901 = vrot.slane %v885, %v900
    %v906 = vadd.f32 %v843, %v889
    %v907 = vadd.f32 %v848, %v893
    %v908 = vadd.f32 %v853, %v897
    %v909 = vadd.f32 %v858, %v901
    %vm910 = vcmp.ge.f32.partialorder %v906, 0.0
    %vm911 = vcmp.ge.f32.partialorder %v907, 0.0
    %vm912 = vcmp.ge.f32.partialorder %v908, 0.0
    %vm913 = vcmp.ge.f32.partialorder %v909, 0.0
    %v914 = vmul.f32 %v906, 0.01
    %v915 = vmul.f32 %v907, 0.01
    %v916 = vmul.f32 %v908, 0.01
    %v917 = vmul.f32 %v909, 0.01
    %v918 = vsel %vm910, %v906, %v914
    %v919 = vsel %vm911, %v907, %v915
    %v920 = vsel %vm912, %v908, %v916
    %v921 = vsel %vm913, %v909, %v917
    %v922 = vld [vmem:[#allocation5] sm:$0xff]
    %v923 = vld [vmem:[#allocation5 + $0x8] sm:$0xff]
    %v924 = vld [vmem:[#allocation5 + $0x10] sm:$0xff]
    %v925 = vld [vmem:[#allocation5 + $0x18] sm:$0xff]
    %v926 = vld [vmem:[%s6] sm:$0x1]
    %v928 = vlaneseq
    %v929 = vshrl.u32 %v928, 7
    %v930 = vsub.s32 0, %v929
    %v931 = vrot.slane %v926, %v930
    %v934 = vsel %vm67, %v918, 0
    %v937 = vsel %vm67, %v919, 0
    %v940 = vsel %vm67, %v920, 0
    %v943 = vsel %vm67, %v921, 0
    %945 = vmatprep.subr.mxu0 0.0
    %946 = vmatpush1.msra.mxu0 %v922
    %947 = vmatprep.subr.mxu0 0.0
    %948 = vmatpush1.msra.mxu0 %v923
    %949 = vmatprep.subr.mxu0 0.0
    %950 = vmatpush1.msra.mxu0 %v924
    %951 = vmatprep.subr.mxu0 0.0
    %952 = vmatpush1.msra.mxu0 %v925
    %953 = vmatprep.subr.mxu0 0.0
    %954 = vmatpush1.msra.mxu0 0.0
    %955 = vmatprep.subr.mxu0 0.0
    %956 = vmatpush1.msra.mxu0 0.0
    %957 = vmatprep.subr.mxu0 0.0
    %958 = vmatpush1.msra.mxu0 0.0
    %959 = vmatprep.subr.mxu0 0.0
    %960 = vmatpush1.msra.mxu0 0.0
    %961 = vmatprep.subr.mxu0 0.0
    %962 = vmatpush1.msra.mxu0 0.0
    %963 = vmatprep.subr.mxu0 0.0
    %964 = vmatpush1.msra.mxu0 0.0
    %965 = vmatprep.subr.mxu0 0.0
    %966 = vmatpush1.msra.mxu0 0.0
    %967 = vmatprep.subr.mxu0 0.0
    %968 = vmatpush1.msra.mxu0 0.0
    %969 = vmatprep.subr.mxu0 0.0
    %970 = vmatpush1.msra.mxu0 0.0
    %971 = vmatprep.subr.mxu0 0.0
    %972 = vmatpush1.msra.mxu0 0.0
    %973 = vmatprep.subr.mxu0 0.0
    %974 = vmatpush1.msra.mxu0 0.0
    %975 = vmatprep.subr.mxu0 0.0
    %976 = vmatpush1.msra.mxu0 0.0
    %977 = vmatprep.subr.mxu0 0.0
    %978 = vmatpush1.msra.mxu0 0.0
    %979 = vmatprep.subr.mxu0 0.0
    %980 = vmatpush1.msra.mxu0 0.0
    %981 = vmatprep.subr.mxu0 0.0
    %982 = vmatpush1.msra.mxu0 0.0
    %983 = vmatprep.subr.mxu0 0.0
    %984 = vmatpush1.msra.mxu0 0.0
    %985 = vmatprep.subr.mxu0 0.0
    %986 = vmatpush1.msra.mxu0 0.0
    %987 = vmatprep.subr.mxu0 0.0
    %988 = vmatpush1.msra.mxu0 0.0
    %989 = vmatprep.subr.mxu0 0.0
    %990 = vmatpush1.msra.mxu0 0.0
    %991 = vmatprep.subr.mxu0 0.0
    %992 = vmatpush1.msra.mxu0 0.0
    %993 = vmatprep.subr.mxu0 0.0
    %994 = vmatpush1.msra.mxu0 0.0
    %995 = vmatprep.subr.mxu0 0.0
    %996 = vmatpush1.msra.mxu0 0.0
    %997 = vmatprep.subr.mxu0 0.0
    %998 = vmatpush1.msra.mxu0 0.0
    %999 = vmatprep.subr.mxu0 0.0
    %1000 = vmatpush1.msra.mxu0 0.0
    %1001 = vmatprep.subr.mxu0 0.0
    %1002 = vmatpush1.msra.mxu0 0.0
    %1003 = vmatprep.subr.mxu0 0.0
    %1004 = vmatpush1.msra.mxu0 0.0
    %1005 = vmatprep.subr.mxu0 0.0
    %1006 = vmatpush1.msra.mxu0 0.0
    %1007 = vmatprep.subr.mxu0 0.0
    %1008 = vmatpush1.msra.mxu0 0.0
    %1009 = vmatprep.mubr.f32.mxu0 0.0
    %1010 = vmatmul.mubr.f32.gmra.mrb[0].mxu0 %v934
    %v1011 = vpop.f32.mrb[0].mxu0
    %v1012 = vadd.f32 %v931, %v1011
    %v1013 = vpop.f32.mrb[0].mxu0
    %1014 = vmatprep.mubr.f32.mxu0 0.0
    %1015 = vmatmul.mubr.f32.gmra.mrb[0].mxu0 %v937
    %v1016 = vpop.f32.mrb[0].mxu0
    %v1017 = vadd.f32 %v931, %v1016
    %v1018 = vpop.f32.mrb[0].mxu0
    %1019 = vmatprep.mubr.f32.mxu0 0.0
    %1020 = vmatmul.mubr.f32.gmra.mrb[0].mxu0 %v940
    %v1021 = vpop.f32.mrb[0].mxu0
    %v1022 = vadd.f32 %v931, %v1021
    %v1023 = vpop.f32.mrb[0].mxu0
    %1024 = vmatprep.mubr.f32.mxu0 0.0
    %1025 = vmatmul.mubr.f32.gmra.mrb[0].mxu0 %v943
    %v1026 = vpop.f32.mrb[0].mxu0
    %v1027 = vadd.f32 %v931, %v1026
    %v1028 = vpop.f32.mrb[0].mxu0
    %1029 = vdwg.mxu0
    %1030 = vmax.xlane.f32.xlu0 %v1012
    %v1031 = vpop.xlane.xlu0 %1030
    %1032 = vmax.xlane.f32.xlu0 %v1017
    %v1033 = vpop.xlane.xlu0 %1032
    %1034 = vmax.xlane.f32.xlu0 %v1022
    %v1035 = vpop.xlane.xlu0 %1034
    %1036 = vmax.xlane.f32.xlu0 %v1027
    %v1037 = vpop.xlane.xlu0 %1036
    %v1038 = vsub.f32 %v1012, %v1031
    %v1039 = vsub.f32 %v1017, %v1033
    %v1040 = vsub.f32 %v1022, %v1035
    %v1041 = vsub.f32 %v1027, %v1037
    %v1042 = vmul.f32 %v1038, 1.442695
    %v1043 = vpow.pop %v1042
    %v1044 = vmul.f32 %v1039, 1.442695
    %v1045 = vpow.pop %v1044
    %v1046 = vmul.f32 %v1040, 1.442695
    %v1047 = vpow.pop %v1046
    %v1048 = vmul.f32 %v1041, 1.442695
    %v1049 = vpow.pop %v1048
    %1050 = vadd.xlane.f32.xlu0 %v1043
    %v1051 = vpop.xlane.xlu0 %1050
    %1052 = vadd.xlane.f32.xlu0 %v1045
    %v1053 = vpop.xlane.xlu0 %1052
    %1054 = vadd.xlane.f32.xlu0 %v1047
    %v1055 = vpop.xlane.xlu0 %1054
    %1056 = vadd.xlane.f32.xlu0 %v1049
    %v1057 = vpop.xlane.xlu0 %1056
    %v1058 = vlog2.pop %v1051
    %v1059 = vmul.f32 %v1058, 0.6931472
    %v1060 = vlog2.pop %v1053
    %v1061 = vmul.f32 %v1060, 0.6931472
    %v1062 = vlog2.pop %v1055
    %v1063 = vmul.f32 %v1062, 0.6931472
    %v1064 = vlog2.pop %v1057
    %v1065 = vmul.f32 %v1064, 0.6931472
    %v1066 = vsub.f32 %v1038, %v1059
    %v1067 = vsub.f32 %v1039, %v1061
    %v1068 = vsub.f32 %v1040, %v1063
    %v1069 = vsub.f32 %v1041, %v1065
    %1070 = vst [vmem:[#allocation7] sm:$0xff] %v1066
    %1071 = vst [vmem:[#allocation7 + $0x8] sm:$0xff] %v1067
    %1072 = vst [vmem:[#allocation7 + $0x10] sm:$0xff] %v1068
    %1073 = vst [vmem:[#allocation7 + $0x18] sm:$0xff] %v1069
    // Predicated region
    $region38: #{tpu_custom_call.1} parent=1 // pred_check
      _
    $region39: #{tpu_custom_call.1} parent=1 // pred_check_branch
      %1075 = sbr.rel (0) target = $region41
    $region40: #{tpu_custom_call.1} parent=1 // pred_region
      %s1077 = ssub.s32 512, 512
      %1078 = vsyncadd [#allocation4], %s1077
      %s1079 = sshll.u32 [#allocation7], 4
      %s1080 = int_to_ptr.vmem [resolvable:$true] %s1079
      %1085 = dma.vmem_to_hbm [thread:$0]  %s1080, 512, %s7, [#allocation4], 128, 128, 8
    $region41: #{tpu_custom_call.1} parent=1 // pred_fallthru
      _
    // Predicated region
    $region42: #{tpu_custom_call.1} parent=1 // pred_check
      _
    $region43: #{tpu_custom_call.1} parent=1 // pred_check_branch
      %1087 = sbr.rel (0) target = $region45
    $region44: #{tpu_custom_call.1} parent=1 // pred_region
      %1088 = dma.done [#allocation4], 512
    $region45: #{tpu_custom_call.1} parent=1 // pred_fallthru
      _
    %1089 = vsyncpa [#allocation3], 1
    %1090 = vsyncpa [#allocation6], 1
    %1091 = vsyncpa [#allocation4], 1

</llo_original>
